<compile_context>
chip_gen: v6e
topology: v6e:2x2x1
jax: 0.10.0
libtpu: 0.0.40
codegen_flags: <defaults>
</compile_context>

<pallas_src>
import functools

import jax
import jax.numpy as jnp
import numpy as np
from jax.experimental import pallas as pl
from jax.experimental.pallas import tpu as pltpu

HIDDEN = 64  # DEFAULT_HIDDEN_UNITS
_MAX_BATCH_TILE = 512


# ----------------------------------------------------------------------------
# Kernel: fused DAC forward (all heads, all options)
# ----------------------------------------------------------------------------
def _dac_kernel(x_ref, w1_ref, b1_ref, w2_ref, b2_ref, w3_ref, b3_ref,
                out_ref, *, na, no):
    """na = num_options*action_dim, no = num_options."""
    x = x_ref[...]                                              # (bt, obs_dim)

    # 3 wide matmuls cover every head: layer-1 concatenated, layer-2
    # block-diagonal, layer-3 block-structured (columns = packed outputs).
    h = jnp.tanh(jnp.dot(x, w1_ref[...],
                         preferred_element_type=jnp.float32) + b1_ref[...])
    h = jnp.tanh(jnp.dot(h, w2_ref[...],
                         preferred_element_type=jnp.float32) + b2_ref[...])
    z = jnp.dot(h, w3_ref[...],
                preferred_element_type=jnp.float32) + b3_ref[...]   # (bt, C3)

    # Column layout of z: [ mean (na) | beta (no) | master logits (no) |
    #                       q_option (no) | zero padding ]
    col = jax.lax.broadcasted_iota(jnp.int32, z.shape, 1)
    mean_m = col < na
    beta_m = (col >= na) & (col < na + no)
    mp_m = (col >= na + no) & (col < na + 2 * no)

    tanh_z = jnp.tanh(z)                                        # policy mean
    sig_z = 1.0 / (1.0 + jnp.exp(-z))                           # termination

    # Masked softmax over the master-policy lanes only.
    z_mp = jnp.where(mp_m, z, -jnp.inf)
    m = jnp.max(z_mp, axis=-1, keepdims=True)
    e = jnp.exp(z_mp - m)                                       # 0 off-region
    soft = e / jnp.sum(e, axis=-1, keepdims=True)

    out = z                                                     # q_option / pad
    out = jnp.where(mean_m, tanh_z, out)
    out = jnp.where(beta_m, sig_z, out)
    out = jnp.where(mp_m, soft, out)
    out_ref[...] = out                                          # lane-dense vst


# ----------------------------------------------------------------------------
# Wrapper
# ----------------------------------------------------------------------------
def _dac_call(x, pk, na, no):
    B, obs_dim = x.shape
    C1 = pk["W1"].shape[1]
    C3 = pk["W3"].shape[1]

    bt = B if B <= _MAX_BATCH_TILE else _MAX_BATCH_TILE
    grid = (pl.cdiv(B, bt),)

    def resident(shape):  # weights: same block every grid step -> stay in VMEM
        return pl.BlockSpec(shape, lambda i: (0, 0))

    in_specs = [
        pl.BlockSpec((bt, obs_dim), lambda i: (i, 0)),          # x batch tile
        resident((obs_dim, C1)), resident((1, C1)),             # layer 1
        resident((C1, C1)), resident((1, C1)),                  # layer 2
        resident((C1, C3)), resident((1, C3)),                  # layer 3
    ]
    out_specs = pl.BlockSpec((bt, C3), lambda i: (i, 0))
    out_shape = jax.ShapeDtypeStruct((B, C3), jnp.float32)

    kernel = functools.partial(_dac_kernel, na=na, no=no)
    return pl.pallas_call(
        kernel,
        grid=grid,
        in_specs=in_specs,
        out_specs=out_specs,
        out_shape=out_shape,
        compiler_params=pltpu.CompilerParams(
            dimension_semantics=("parallel",)),                 # megacore on v7x
    )(x, pk["W1"], pk["b1"], pk["W2"], pk["b2"], pk["W3"], pk["b3"])


def dac_forward(x, packed, num_options, action_dim):
    B = x.shape[0]
    NO, A = num_options, action_dim
    na = NO * A

    out = _dac_call(x, packed, na, NO)                          # (B, C3)

    mean = out[:, :na].reshape(B, NO, A)
    beta = out[:, na:na + NO]
    master_policy = out[:, na + NO:na + 2 * NO]
    q_option = out[:, na + 2 * NO:na + 3 * NO]

    # std = softplus(param): no dependence on x -> compute outside the kernel.
    std = jnp.broadcast_to(
        jnp.transpose(jax.nn.softplus(packed["std"]), (1, 0, 2)), (B, NO, A))

    return {
        "mean": mean,                  # (B, NO, A)
        "std": std,                    # (B, NO, A)
        "beta": beta,                  # (B, NO)
        "q_option": q_option,          # (B, NO)
        "master_policy": master_policy,  # (B, NO)
    }


# ----------------------------------------------------------------------------
# Parameter init (orthogonal W, zero bias) and one-time packing
# ----------------------------------------------------------------------------
def _orthogonal(key, in_dim, out_dim):
    n, m = max(in_dim, out_dim), min(in_dim, out_dim)
    a = jax.random.normal(key, (n, m), dtype=jnp.float32)
    q, r = jnp.linalg.qr(a)
    q = q * jnp.sign(jnp.diagonal(r))
    w = q if (in_dim, out_dim) == (n, m) else q.T               # stored (in, out)
    return w.astype(jnp.float32)


def init_params(key, obs_dim, action_dim, num_options, hidden=HIDDEN):
    keys = iter(jax.random.split(key, 8 * num_options + 16))

    def linear(in_d, out_d):
        return _orthogonal(next(keys), in_d, out_d), jnp.zeros((1, out_d), jnp.float32)

    def stacked_linear(in_d, out_d):
        ws, bs = zip(*[linear(in_d, out_d) for _ in range(num_options)])
        return jnp.stack(ws), jnp.stack(bs)                     # (NO,in,out),(NO,1,out)

    p = {}
    p["pol_w1"], p["pol_b1"] = stacked_linear(obs_dim, hidden)
    p["pol_w2"], p["pol_b2"] = stacked_linear(hidden, hidden)
    p["pol_w3"], p["pol_b3"] = stacked_linear(hidden, action_dim)
    p["term_w1"], p["term_b1"] = stacked_linear(obs_dim, hidden)
    p["term_w2"], p["term_b2"] = stacked_linear(hidden, hidden)
    p["term_w3"], p["term_b3"] = stacked_linear(hidden, 1)
    p["std"] = jnp.zeros((num_options, 1, action_dim), jnp.float32)
    p["mp_w1"], p["mp_b1"] = linear(obs_dim, hidden)
    p["mp_w2"], p["mp_b2"] = linear(hidden, hidden)
    p["mp_w3"], p["mp_b3"] = linear(hidden, num_options)
    p["val_w1"], p["val_b1"] = linear(obs_dim, hidden)
    p["val_w2"], p["val_b2"] = linear(hidden, hidden)
    p["val_w3"], p["val_b3"] = linear(hidden, num_options)
    return p


def pack_params(p, obs_dim, action_dim, num_options, hidden=HIDDEN):
    """One-time packing of per-head params into the wide/block layouts."""
    NO, H, A = num_options, hidden, action_dim

    def heads(name):
        return ([p["pol_" + name][o] for o in range(NO)]
                + [p["term_" + name][o] for o in range(NO)]
                + [p["mp_" + name], p["val_" + name]])

    w1_l, b1_l = heads("w1"), heads("b1")
    w2_l, b2_l = heads("w2"), heads("b2")
    w3_l, b3_l = heads("w3"), heads("b3")

    C1 = (2 * NO + 2) * H
    out_dims = [A] * NO + [1] * NO + [NO, NO]
    out_total = sum(out_dims)
    C3 = max(128, ((out_total + 127) // 128) * 128)             # lane-dense pad

    W1 = jnp.concatenate(w1_l, axis=1)                          # (obs, C1)
    b1 = jnp.concatenate(b1_l, axis=1)                          # (1, C1)
    W2 = jax.scipy.linalg.block_diag(*w2_l)                     # (C1, C1)
    b2 = jnp.concatenate(b2_l, axis=1)                          # (1, C1)

    W3 = jnp.zeros((C1, C3), jnp.float32)
    b3 = jnp.zeros((1, C3), jnp.float32)
    col = 0
    for i, (w, b) in enumerate(zip(w3_l, b3_l)):
        d = out_dims[i]
        W3 = W3.at[i * H:(i + 1) * H, col:col + d].set(w)
        b3 = b3.at[:, col:col + d].set(b)
        col += d

    return {"W1": W1, "b1": b1, "W2": W2, "b2": b2, "W3": W3, "b3": b3,
            "std": p["std"]}


# ----------------------------------------------------------------------------
# Pure-JAX reference (for correctness check only)
# ----------------------------------------------------------------------------
def reference_forward(x, p, num_options):
    def mlp(z, w1, b1, w2, b2, w3, b3):
        h = jnp.tanh(z @ w1 + b1)
        h = jnp.tanh(h @ w2 + b2)
        return h @ w3 + b3

    means, stds, betas = [], [], []
    for o in range(num_options):
        m = jnp.tanh(mlp(x, p["pol_w1"][o], p["pol_b1"][o], p["pol_w2"][o],
                         p["pol_b2"][o], p["pol_w3"][o], p["pol_b3"][o]))
        b = jax.nn.sigmoid(mlp(x, p["term_w1"][o], p["term_b1"][o], p["term_w2"][o],
                               p["term_b2"][o], p["term_w3"][o], p["term_b3"][o]))
        s = jnp.broadcast_to(jax.nn.softplus(p["std"][o]), m.shape)
        means.append(m[:, None, :]); stds.append(s[:, None, :]); betas.append(b)
    logits = mlp(x, p["mp_w1"], p["mp_b1"], p["mp_w2"], p["mp_b2"],
                 p["mp_w3"], p["mp_b3"])
    return {
        "mean": jnp.concatenate(means, axis=1),
        "std": jnp.concatenate(stds, axis=1),
        "beta": jnp.concatenate(betas, axis=1),
        "q_option": mlp(x, p["val_w1"], p["val_b1"], p["val_w2"], p["val_b2"],
                        p["val_w3"], p["val_b3"]),
        "master_policy": jax.nn.softmax(logits, axis=-1),
    }


if __name__ == "__main__":
    B, obs_dim, action_dim, num_options = 2, 16, 4, 3
    key = jax.random.PRNGKey(0)
    pkey, xkey = jax.random.split(key)

    params = init_params(pkey, obs_dim, action_dim, num_options)
    packed = pack_params(params, obs_dim, action_dim, num_options)
    x = jax.random.normal(xkey, (B, obs_dim), dtype=jnp.float32)

    out = dac_forward(x, packed, num_options, action_dim)
    jax.block_until_ready(out)

    ref = reference_forward(x, params, num_options)
    for k in ("mean", "std", "beta", "q_option", "master_policy"):
        np.testing.assert_allclose(np.asarray(out[k]), np.asarray(ref[k]),
                                   atol=1e-4, rtol=1e-4)
    print("KERNEL_OK")
</pallas_src>

<mosaic_0001>
module attributes {stable_mosaic.version = 11 : i64} {
  func.func @_dac_kernel(%arg0: i32, %arg1: memref<2x16xf32, #tpu.memory_space<vmem>>, %arg2: memref<16x512xf32, #tpu.memory_space<vmem>>, %arg3: memref<1x512xf32, #tpu.memory_space<vmem>>, %arg4: memref<512x512xf32, #tpu.memory_space<vmem>>, %arg5: memref<1x512xf32, #tpu.memory_space<vmem>>, %arg6: memref<512x128xf32, #tpu.memory_space<vmem>>, %arg7: memref<1x128xf32, #tpu.memory_space<vmem>>, %arg8: memref<2x128xf32, #tpu.memory_space<vmem>>) attributes {dimension_semantics = [#tpu.dimension_semantics<parallel>], iteration_bounds = array<i64: 1>, scalar_prefetch = 0 : i64, scratch_operands = 0 : i64, tpu.core_type = #tpu.core_type<tc>, window_params = [{transform_indices = @transform_0, window_bounds = array<i64: 2, 16>}, {pipeline_mode = #tpu.pipeline_mode<synchronous>, transform_indices = @transform_1, window_bounds = array<i64: 16, 512>}, {pipeline_mode = #tpu.pipeline_mode<synchronous>, transform_indices = @transform_2, window_bounds = array<i64: 1, 512>}, {pipeline_mode = #tpu.pipeline_mode<synchronous>, transform_indices = @transform_3, window_bounds = array<i64: 512, 512>}, {pipeline_mode = #tpu.pipeline_mode<synchronous>, transform_indices = @transform_4, window_bounds = array<i64: 1, 512>}, {pipeline_mode = #tpu.pipeline_mode<synchronous>, transform_indices = @transform_5, window_bounds = array<i64: 512, 128>}, {pipeline_mode = #tpu.pipeline_mode<synchronous>, transform_indices = @transform_6, window_bounds = array<i64: 1, 128>}, {transform_indices = @transform_7, window_bounds = array<i64: 2, 128>}]} {
    %c0 = arith.constant 0 : index
    %c0_0 = arith.constant 0 : index
    %0 = vector.load %arg1[%c0, %c0_0] : memref<2x16xf32, #tpu.memory_space<vmem>>, vector<2x16xf32>
    %c0_1 = arith.constant 0 : index
    %c0_2 = arith.constant 0 : index
    %1 = vector.load %arg2[%c0_1, %c0_2] : memref<16x512xf32, #tpu.memory_space<vmem>>, vector<16x512xf32>
    %cst = arith.constant dense<0.000000e+00> : vector<2x512xf32>
    %2 = tpu.matmul %0, %1, %cst {dimension_numbers = #tpu.dot_dimension_numbers<[1], [0], [0], [1], [0, 0, 1, 1], [], []>} : vector<2x16xf32>, vector<16x512xf32>, vector<2x512xf32> -> vector<2x512xf32>
    %c0_3 = arith.constant 0 : index
    %c0_4 = arith.constant 0 : index
    %3 = vector.load %arg3[%c0_3, %c0_4] : memref<1x512xf32, #tpu.memory_space<vmem>>, vector<1x512xf32>
    %4 = vector.broadcast %3 : vector<1x512xf32> to vector<2x512xf32>
    %5 = arith.addf %2, %4 : vector<2x512xf32>
    %6 = math.tanh %5 : vector<2x512xf32>
    %c0_5 = arith.constant 0 : index
    %c0_6 = arith.constant 0 : index
    %7 = vector.load %arg4[%c0_5, %c0_6] : memref<512x512xf32, #tpu.memory_space<vmem>>, vector<512x512xf32>
    %cst_7 = arith.constant dense<0.000000e+00> : vector<2x512xf32>
    %8 = tpu.matmul %6, %7, %cst_7 {dimension_numbers = #tpu.dot_dimension_numbers<[1], [0], [0], [1], [0, 0, 1, 1], [], []>} : vector<2x512xf32>, vector<512x512xf32>, vector<2x512xf32> -> vector<2x512xf32>
    %c0_8 = arith.constant 0 : index
    %c0_9 = arith.constant 0 : index
    %9 = vector.load %arg5[%c0_8, %c0_9] : memref<1x512xf32, #tpu.memory_space<vmem>>, vector<1x512xf32>
    %10 = vector.broadcast %9 : vector<1x512xf32> to vector<2x512xf32>
    %11 = arith.addf %8, %10 : vector<2x512xf32>
    %12 = math.tanh %11 : vector<2x512xf32>
    %c0_10 = arith.constant 0 : index
    %c0_11 = arith.constant 0 : index
    %13 = vector.load %arg6[%c0_10, %c0_11] : memref<512x128xf32, #tpu.memory_space<vmem>>, vector<512x128xf32>
    %cst_12 = arith.constant dense<0.000000e+00> : vector<2x128xf32>
    %14 = tpu.matmul %12, %13, %cst_12 {dimension_numbers = #tpu.dot_dimension_numbers<[1], [0], [0], [1], [0, 0, 1, 1], [], []>} : vector<2x512xf32>, vector<512x128xf32>, vector<2x128xf32> -> vector<2x128xf32>
    %c0_13 = arith.constant 0 : index
    %c0_14 = arith.constant 0 : index
    %15 = vector.load %arg7[%c0_13, %c0_14] : memref<1x128xf32, #tpu.memory_space<vmem>>, vector<1x128xf32>
    %16 = vector.broadcast %15 : vector<1x128xf32> to vector<2x128xf32>
    %17 = arith.addf %14, %16 : vector<2x128xf32>
    %18 = tpu.iota {dimensions = array<i32: 1>} : vector<2x128xi32>
    %c12_i32 = arith.constant 12 : i32
    %19 = vector.broadcast %c12_i32 : i32 to vector<2x128xi32>
    %20 = arith.cmpi slt, %18, %19 : vector<2x128xi32>
    %c12_i32_15 = arith.constant 12 : i32
    %21 = vector.broadcast %c12_i32_15 : i32 to vector<2x128xi32>
    %22 = arith.cmpi sge, %18, %21 : vector<2x128xi32>
    %c15_i32 = arith.constant 15 : i32
    %23 = vector.broadcast %c15_i32 : i32 to vector<2x128xi32>
    %24 = arith.cmpi slt, %18, %23 : vector<2x128xi32>
    %25 = arith.andi %22, %24 : vector<2x128xi1>
    %c15_i32_16 = arith.constant 15 : i32
    %26 = vector.broadcast %c15_i32_16 : i32 to vector<2x128xi32>
    %27 = arith.cmpi sge, %18, %26 : vector<2x128xi32>
    %c18_i32 = arith.constant 18 : i32
    %28 = vector.broadcast %c18_i32 : i32 to vector<2x128xi32>
    %29 = arith.cmpi slt, %18, %28 : vector<2x128xi32>
    %30 = arith.andi %27, %29 : vector<2x128xi1>
    %31 = math.tanh %17 : vector<2x128xf32>
    %cst_17 = arith.constant 0.000000e+00 : f32
    %32 = vector.broadcast %cst_17 : f32 to vector<2x128xf32>
    %33 = arith.subf %32, %17 : vector<2x128xf32>
    %34 = math.exp %33 : vector<2x128xf32>
    %cst_18 = arith.constant 1.000000e+00 : f32
    %35 = vector.broadcast %cst_18 : f32 to vector<2x128xf32>
    %36 = arith.addf %35, %34 : vector<2x128xf32>
    %cst_19 = arith.constant 1.000000e+00 : f32
    %37 = vector.broadcast %cst_19 : f32 to vector<2x128xf32>
    %38 = arith.divf %37, %36 : vector<2x128xf32>
    %cst_20 = arith.constant 0xFF800000 : f32
    %39 = vector.broadcast %cst_20 : f32 to vector<2x128xf32>
    %40 = arith.select %30, %17, %39 : vector<2x128xi1>, vector<2x128xf32>
    %cst_21 = arith.constant dense<0xFF800000> : vector<2xf32>
    %41 = vector.multi_reduction <maximumf>, %40, %cst_21 [1] : vector<2x128xf32> to vector<2xf32>
    %42 = vector.shape_cast %41 : vector<2xf32> to vector<2x1xf32>
    %43 = vector.broadcast %42 : vector<2x1xf32> to vector<2x128xf32>
    %44 = arith.subf %40, %43 : vector<2x128xf32>
    %45 = math.exp %44 : vector<2x128xf32>
    %cst_22 = arith.constant dense<0.000000e+00> : vector<2xf32>
    %46 = vector.multi_reduction <add>, %45, %cst_22 [1] : vector<2x128xf32> to vector<2xf32>
    %47 = vector.shape_cast %46 : vector<2xf32> to vector<2x1xf32>
    %48 = vector.broadcast %47 : vector<2x1xf32> to vector<2x128xf32>
    %49 = arith.divf %45, %48 : vector<2x128xf32>
    %50 = arith.select %20, %31, %17 : vector<2x128xi1>, vector<2x128xf32>
    %51 = arith.select %25, %38, %50 : vector<2x128xi1>, vector<2x128xf32>
    %52 = arith.select %30, %49, %51 : vector<2x128xi1>, vector<2x128xf32>
    %c0_23 = arith.constant 0 : index
    %c0_24 = arith.constant 0 : index
    %53 = vector.load %arg8[%c0_23, %c0_24] : memref<2x128xf32, #tpu.memory_space<vmem>>, vector<2x128xf32>
    tpu.vector_store %arg8[%c0_23, %c0_24], %52 {strides = array<i32>} : memref<2x128xf32, #tpu.memory_space<vmem>>, vector<2x128xf32>,
    return
  }
  func.func @transform_0(%arg0: i32) -> (i32, i32) {
    %c0_i32 = arith.constant 0 : i32
    %c0_i32_0 = arith.constant 0 : i32
    return %arg0, %c0_i32 : i32, i32
  }
  func.func @transform_1(%arg0: i32) -> (i32, i32) {
    %c0_i32 = arith.constant 0 : i32
    %c0_i32_0 = arith.constant 0 : i32
    %c0_i32_1 = arith.constant 0 : i32
    return %c0_i32, %c0_i32_0 : i32, i32
  }
  func.func @transform_2(%arg0: i32) -> (i32, i32) {
    %c0_i32 = arith.constant 0 : i32
    %c0_i32_0 = arith.constant 0 : i32
    %c0_i32_1 = arith.constant 0 : i32
    return %c0_i32, %c0_i32_0 : i32, i32
  }
  func.func @transform_3(%arg0: i32) -> (i32, i32) {
    %c0_i32 = arith.constant 0 : i32
    %c0_i32_0 = arith.constant 0 : i32
    %c0_i32_1 = arith.constant 0 : i32
    return %c0_i32, %c0_i32_0 : i32, i32
  }
  func.func @transform_4(%arg0: i32) -> (i32, i32) {
    %c0_i32 = arith.constant 0 : i32
    %c0_i32_0 = arith.constant 0 : i32
    %c0_i32_1 = arith.constant 0 : i32
    return %c0_i32, %c0_i32_0 : i32, i32
  }
  func.func @transform_5(%arg0: i32) -> (i32, i32) {
    %c0_i32 = arith.constant 0 : i32
    %c0_i32_0 = arith.constant 0 : i32
    %c0_i32_1 = arith.constant 0 : i32
    return %c0_i32, %c0_i32_0 : i32, i32
  }
  func.func @transform_6(%arg0: i32) -> (i32, i32) {
    %c0_i32 = arith.constant 0 : i32
    %c0_i32_0 = arith.constant 0 : i32
    %c0_i32_1 = arith.constant 0 : i32
    return %c0_i32, %c0_i32_0 : i32, i32
  }
  func.func @transform_7(%arg0: i32) -> (i32, i32) {
    %c0_i32 = arith.constant 0 : i32
    %c0_i32_0 = arith.constant 0 : i32
    return %arg0, %c0_i32 : i32, i32
  }
}

</mosaic_0001>

<llo_original>
// kernel: tpu_custom_call.1
$region0: #{tpu_custom_call.1}
  #allocation0 [shape = 'u32[]', space=smem, size = 0x4, offset = 0x4, fixed_abs, tag = 'smem constant byte address 0x4 - core index']
  #allocation1 [shape = 'u32[144,128]{1,0:T(1,128)}', space=vmem, size = 0x12000, scoped, tag = 'internal scratch']
  %s0 = inlined_call_operand.hbm [shape: f32[2,16], index: 0, kind: input, shape index: {}]
  %s1 = inlined_call_operand.hbm [shape: f32[16,512], index: 1, kind: input, shape index: {}]
  %s2 = inlined_call_operand.hbm [shape: f32[1,512], index: 2, kind: input, shape index: {}]
  %s3 = inlined_call_operand.hbm [shape: f32[512,512], index: 3, kind: input, shape index: {}]
  %s4 = inlined_call_operand.vmem [shape: f32[1,512], index: 4, kind: input, shape index: {}]
  %s5 = inlined_call_operand.hbm [shape: f32[512,128], index: 5, kind: input, shape index: {}]
  %s6 = inlined_call_operand.vmem [shape: f32[1,128], index: 6, kind: input, shape index: {}]
  %s7 = inlined_call_operand.hbm [shape: f32[2,128], index: 7, kind: output, shape index: {}]
  %s8 = sld [smem:[#allocation0]]
  $region58: #{tpu_custom_call.1} parent=0
    _
  %s10 = ssub.s32 1, %s8
  %s11 = scalar_select 0, %s10, %s8
  $region1: #{tpu_custom_call.1} parent=0
    #allocation2 [shape = 'u8[1024]{0}', space=vmem, size = 0x400, scoped, tag = 'input window, operand 0, single buffered']
    #allocation3 [shape = 's32[1]{0}', space=sflag, size = 0x4, scoped, tag = 'scoped memory for tpu_custom_call.1']
    #allocation4 [shape = 's32[1]{0}', space=sflag, size = 0x4, scoped, tag = 'scoped memory for tpu_custom_call.1']
    #allocation5 [shape = 'u8[32768]{0}', space=vmem, size = 0x8000, scoped, tag = 'input window, operand 1, single buffered']
    #allocation6 [shape = 's32[1]{0}', space=sflag, size = 0x4, scoped, tag = 'scoped memory for tpu_custom_call.1']
    #allocation7 [shape = 'u8[2048]{0}', space=vmem, size = 0x800, scoped, tag = 'input window, operand 2, single buffered']
    #allocation8 [shape = 'u8[1048576]{0}', space=vmem, size = 0x100000, scoped, tag = 'input window, operand 3, single buffered']
    #allocation9 [shape = 's32[1]{0}', space=sflag, size = 0x4, scoped, tag = 'scoped memory for tpu_custom_call.1']
    #allocation10 [shape = 'u8[262144]{0}', space=vmem, size = 0x40000, scoped, tag = 'input window, operand 5, single buffered']
    #allocation11 [shape = 'u8[1024]{0}', space=vmem, size = 0x400, scoped, tag = 'output window, operand 0, single buffered']
    %12 = vsyncpa [#allocation3], 0
    %13 = vsyncpa [#allocation6], 0
    %14 = vsyncpa [#allocation9], 0
    %15 = vsyncpa [#allocation4], 0
    // Predicated region
    $region2: #{tpu_custom_call.1} parent=1 // pred_check
      _
    $region3: #{tpu_custom_call.1} parent=1 // pred_check_branch
      %17 = sbr.rel (0) target = $region5
    $region4: #{tpu_custom_call.1} parent=1 // pred_region
      %s19 = ssub.s32 32, 32
      %20 = vsyncadd [#allocation3], %s19
      %s22 = sshll.u32 [#allocation2], 4
      %s23 = int_to_ptr.vmem [resolvable:$true] %s22
      %25 = dma.hbm_to_vmem [thread:$0]  %s0, 32, %s23, [#allocation3]
    $region5: #{tpu_custom_call.1} parent=1 // pred_fallthru
      _
    // Predicated region
    $region6: #{tpu_custom_call.1} parent=1 // pred_check
      _
    $region7: #{tpu_custom_call.1} parent=1 // pred_check_branch
      %27 = sbr.rel (0) target = $region9
    $region8: #{tpu_custom_call.1} parent=1 // pred_region
      %s29 = ssub.s32 1024, 1024
      %30 = vsyncadd [#allocation6], %s29
      %s31 = sshll.u32 [#allocation5], 4
      %s32 = int_to_ptr.vmem [resolvable:$true] %s31
      %37 = dma.hbm_to_vmem [thread:$0]  %s1, 1024, %s32, [#allocation6], 512, 512, 32
    $region9: #{tpu_custom_call.1} parent=1 // pred_fallthru
      _
    // Predicated region
    $region10: #{tpu_custom_call.1} parent=1 // pred_check
      _
    $region11: #{tpu_custom_call.1} parent=1 // pred_check_branch
      %39 = sbr.rel (0) target = $region13
    $region12: #{tpu_custom_call.1} parent=1 // pred_region
      %s41 = ssub.s32 64, 64
      %42 = vsyncadd [#allocation6], %s41
      %s44 = sshll.u32 [#allocation7], 4
      %s45 = int_to_ptr.vmem [resolvable:$true] %s44
      %47 = dma.hbm_to_vmem [thread:$0]  %s2, 64, %s45, [#allocation6]
    $region13: #{tpu_custom_call.1} parent=1 // pred_fallthru
      _
    // Predicated region
    $region14: #{tpu_custom_call.1} parent=1 // pred_check
      _
    $region15: #{tpu_custom_call.1} parent=1 // pred_check_branch
      %49 = sbr.rel (0) target = $region17
    $region16: #{tpu_custom_call.1} parent=1 // pred_region
      %s51 = ssub.s32 32768, 32768
      %52 = vsyncadd [#allocation9], %s51
      %s53 = sshll.u32 [#allocation8], 4
      %s54 = int_to_ptr.vmem [resolvable:$true] %s53
      %59 = dma.hbm_to_vmem [thread:$0]  %s3, 32768, %s54, [#allocation9], 512, 512, 32
    $region17: #{tpu_custom_call.1} parent=1 // pred_fallthru
      _
    // Predicated region
    $region18: #{tpu_custom_call.1} parent=1 // pred_check
      _
    $region19: #{tpu_custom_call.1} parent=1 // pred_check_branch
      %61 = sbr.rel (0) target = $region21
    $region20: #{tpu_custom_call.1} parent=1 // pred_region
      _
    $region21: #{tpu_custom_call.1} parent=1 // pred_fallthru
      _
    // Predicated region
    $region22: #{tpu_custom_call.1} parent=1 // pred_check
      _
    $region23: #{tpu_custom_call.1} parent=1 // pred_check_branch
      %63 = sbr.rel (0) target = $region25
    $region24: #{tpu_custom_call.1} parent=1 // pred_region
      %s65 = ssub.s32 8192, 8192
      %66 = vsyncadd [#allocation9], %s65
      %s67 = sshll.u32 [#allocation10], 4
      %s68 = int_to_ptr.vmem [resolvable:$true] %s67
      %73 = dma.hbm_to_vmem [thread:$0]  %s5, 8192, %s68, [#allocation9], 128, 128, 8
    $region25: #{tpu_custom_call.1} parent=1 // pred_fallthru
      _
    // Predicated region
    $region26: #{tpu_custom_call.1} parent=1 // pred_check
      _
    $region27: #{tpu_custom_call.1} parent=1 // pred_check_branch
      %75 = sbr.rel (0) target = $region29
    $region28: #{tpu_custom_call.1} parent=1 // pred_region
      _
    $region29: #{tpu_custom_call.1} parent=1 // pred_fallthru
      _
    // Predicated region
    $region30: #{tpu_custom_call.1} parent=1 // pred_check
      _
    $region31: #{tpu_custom_call.1} parent=1 // pred_check_branch
      %77 = sbr.rel (0) target = $region33
    $region32: #{tpu_custom_call.1} parent=1 // pred_region
      %78 = dma.done [#allocation3], 32
    $region33: #{tpu_custom_call.1} parent=1 // pred_fallthru
      _
    // Predicated region
    $region34: #{tpu_custom_call.1} parent=1 // pred_check
      _
    $region35: #{tpu_custom_call.1} parent=1 // pred_check_branch
      %80 = sbr.rel (0) target = $region37
    $region36: #{tpu_custom_call.1} parent=1 // pred_region
      %81 = dma.done [#allocation6], 1024
    $region37: #{tpu_custom_call.1} parent=1 // pred_fallthru
      _
    // Predicated region
    $region38: #{tpu_custom_call.1} parent=1 // pred_check
      _
    $region39: #{tpu_custom_call.1} parent=1 // pred_check_branch
      %83 = sbr.rel (0) target = $region41
    $region40: #{tpu_custom_call.1} parent=1 // pred_region
      %84 = dma.done [#allocation6], 64
    $region41: #{tpu_custom_call.1} parent=1 // pred_fallthru
      _
    // Predicated region
    $region42: #{tpu_custom_call.1} parent=1 // pred_check
      _
    $region43: #{tpu_custom_call.1} parent=1 // pred_check_branch
      %86 = sbr.rel (0) target = $region45
    $region44: #{tpu_custom_call.1} parent=1 // pred_region
      %87 = dma.done [#allocation9], 32768
    $region45: #{tpu_custom_call.1} parent=1 // pred_fallthru
      _
    // Predicated region
    $region46: #{tpu_custom_call.1} parent=1 // pred_check
      _
    $region47: #{tpu_custom_call.1} parent=1 // pred_check_branch
      %89 = sbr.rel (0) target = $region49
    $region48: #{tpu_custom_call.1} parent=1 // pred_region
      %90 = dma.done [#allocation9], 8192
    $region49: #{tpu_custom_call.1} parent=1 // pred_fallthru
      _
    %v91 = vld [vmem:[#allocation2] sm:$0x3]
    %v92 = vld [vmem:[#allocation5] sm:$0xff]
    %v93 = vld [vmem:[#allocation5 + $0x8] sm:$0xff]
    %v94 = vld [vmem:[#allocation5 + $0x10] sm:$0xff]
    %v95 = vld [vmem:[#allocation5 + $0x18] sm:$0xff]
    %v96 = vld [vmem:[#allocation5 + $0x20] sm:$0xff]
    %v97 = vld [vmem:[#allocation5 + $0x28] sm:$0xff]
    %v98 = vld [vmem:[#allocation5 + $0x30] sm:$0xff]
    %v99 = vld [vmem:[#allocation5 + $0x38] sm:$0xff]
    %v100 = vld [vmem:[#allocation7] sm:$0xf]
    %v102 = vlaneseq
    %v103 = vshrl.u32 %v102, 7
    %v104 = vsub.s32 0, %v103
    %v105 = vrot.slane %v100, %v104
    %v106 = vlaneseq
    %v107 = vshrl.u32 %v106, 7
    %v108 = vsub.s32 1, %v107
    %v109 = vrot.slane %v100, %v108
    %v110 = vlaneseq
    %v111 = vshrl.u32 %v110, 7
    %v112 = vsub.s32 2, %v111
    %v113 = vrot.slane %v100, %v112
    %v114 = vlaneseq
    %v115 = vshrl.u32 %v114, 7
    %v116 = vsub.s32 3, %v115
    %v117 = vrot.slane %v100, %v116
    %vm122 = vcmask 130048
    %v124 = vsel %vm122, %v91, 0
    %126 = vmatprep.subr.mxu0 0.0
    %127 = vmatpush1.msra.mxu0 0.0
    %128 = vmatprep.subr.mxu0 0.0
    %129 = vmatpush1.msra.mxu0 0.0
    %130 = vmatprep.subr.mxu0 0.0
    %131 = vmatpush1.msra.mxu0 0.0
    %132 = vmatprep.subr.mxu0 0.0
    %133 = vmatpush1.msra.mxu0 0.0
    %134 = vmatprep.subr.mxu0 0.0
    %135 = vmatpush1.msra.mxu0 0.0
    %136 = vmatprep.subr.mxu0 0.0
    %137 = vmatpush1.msra.mxu0 0.0
    %138 = vmatprep.subr.mxu0 0.0
    %139 = vmatpush1.msra.mxu0 0.0
    %140 = vmatprep.subr.mxu0 0.0
    %141 = vmatpush1.msra.mxu0 0.0
    %142 = vmatprep.subr.mxu0 0.0
    %143 = vmatpush1.msra.mxu0 0.0
    %144 = vmatprep.subr.mxu0 0.0
    %145 = vmatpush1.msra.mxu0 0.0
    %146 = vmatprep.subr.mxu0 0.0
    %147 = vmatpush1.msra.mxu0 0.0
    %148 = vmatprep.subr.mxu0 0.0
    %149 = vmatpush1.msra.mxu0 0.0
    %150 = vmatprep.subr.mxu0 0.0
    %151 = vmatpush1.msra.mxu0 0.0
    %152 = vmatprep.subr.mxu0 0.0
    %153 = vmatpush1.msra.mxu0 0.0
    %154 = vmatprep.subr.mxu0 %v97
    %155 = vmatpush1.msra.mxu0 %v96
    %156 = vmatprep.subr.mxu0 %v93
    %157 = vmatpush1.msra.mxu0 %v92
    %158 = vmatprep.subr.mxu0 0.0
    %159 = vmatpush2.msra.mxu0 0.0
    %160 = vmatprep.subr.mxu0 0.0
    %161 = vmatpush2.msra.mxu0 0.0
    %162 = vmatprep.subr.mxu0 0.0
    %163 = vmatpush2.msra.mxu0 0.0
    %164 = vmatprep.subr.mxu0 0.0
    %165 = vmatpush2.msra.mxu0 0.0
    %166 = vmatprep.subr.mxu0 0.0
    %167 = vmatpush2.msra.mxu0 0.0
    %168 = vmatprep.subr.mxu0 0.0
    %169 = vmatpush2.msra.mxu0 0.0
    %170 = vmatprep.subr.mxu0 0.0
    %171 = vmatpush2.msra.mxu0 0.0
    %172 = vmatprep.subr.mxu0 0.0
    %173 = vmatpush2.msra.mxu0 0.0
    %174 = vmatprep.subr.mxu0 0.0
    %175 = vmatpush2.msra.mxu0 0.0
    %176 = vmatprep.subr.mxu0 0.0
    %177 = vmatpush2.msra.mxu0 0.0
    %178 = vmatprep.subr.mxu0 0.0
    %179 = vmatpush2.msra.mxu0 0.0
    %180 = vmatprep.subr.mxu0 0.0
    %181 = vmatpush2.msra.mxu0 0.0
    %182 = vmatprep.subr.mxu0 0.0
    %183 = vmatpush2.msra.mxu0 0.0
    %184 = vmatprep.subr.mxu0 0.0
    %185 = vmatpush2.msra.mxu0 0.0
    %186 = vmatprep.subr.mxu0 0.0
    %187 = vmatpush2.msra.mxu0 0.0
    %188 = vmatprep.subr.mxu0 0.0
    %189 = vmatpush2.msra.mxu0 0.0
    %190 = vmatprep.mubr.f32.mxu0 0.0
    %191 = vmatmul.mubr.f32.gmra.mxu0 %v124
    %v192 = vpop.f32.mrf.mxu0
    %v193 = vadd.f32 %v105, %v192
    %v194 = vpop.f32.mrf.mxu0
    %v195 = vadd.f32 %v109, %v194
    %196 = vdwg.mxu0
    %197 = vmatprep.subr.mxu0 0.0
    %198 = vmatpush1.msra.mxu0 0.0
    %199 = vmatprep.subr.mxu0 0.0
    %200 = vmatpush1.msra.mxu0 0.0
    %201 = vmatprep.subr.mxu0 0.0
    %202 = vmatpush1.msra.mxu0 0.0
    %203 = vmatprep.subr.mxu0 0.0
    %204 = vmatpush1.msra.mxu0 0.0
    %205 = vmatprep.subr.mxu0 0.0
    %206 = vmatpush1.msra.mxu0 0.0
    %207 = vmatprep.subr.mxu0 0.0
    %208 = vmatpush1.msra.mxu0 0.0
    %209 = vmatprep.subr.mxu0 0.0
    %210 = vmatpush1.msra.mxu0 0.0
    %211 = vmatprep.subr.mxu0 0.0
    %212 = vmatpush1.msra.mxu0 0.0
    %213 = vmatprep.subr.mxu0 0.0
    %214 = vmatpush1.msra.mxu0 0.0
    %215 = vmatprep.subr.mxu0 0.0
    %216 = vmatpush1.msra.mxu0 0.0
    %217 = vmatprep.subr.mxu0 0.0
    %218 = vmatpush1.msra.mxu0 0.0
    %219 = vmatprep.subr.mxu0 0.0
    %220 = vmatpush1.msra.mxu0 0.0
    %221 = vmatprep.subr.mxu0 0.0
    %222 = vmatpush1.msra.mxu0 0.0
    %223 = vmatprep.subr.mxu0 0.0
    %224 = vmatpush1.msra.mxu0 0.0
    %225 = vmatprep.subr.mxu0 %v99
    %226 = vmatpush1.msra.mxu0 %v98
    %227 = vmatprep.subr.mxu0 %v95
    %228 = vmatpush1.msra.mxu0 %v94
    %229 = vmatprep.subr.mxu0 0.0
    %230 = vmatpush2.msra.mxu0 0.0
    %231 = vmatprep.subr.mxu0 0.0
    %232 = vmatpush2.msra.mxu0 0.0
    %233 = vmatprep.subr.mxu0 0.0
    %234 = vmatpush2.msra.mxu0 0.0
    %235 = vmatprep.subr.mxu0 0.0
    %236 = vmatpush2.msra.mxu0 0.0
    %237 = vmatprep.subr.mxu0 0.0
    %238 = vmatpush2.msra.mxu0 0.0
    %239 = vmatprep.subr.mxu0 0.0
    %240 = vmatpush2.msra.mxu0 0.0
    %241 = vmatprep.subr.mxu0 0.0
    %242 = vmatpush2.msra.mxu0 0.0
    %243 = vmatprep.subr.mxu0 0.0
    %244 = vmatpush2.msra.mxu0 0.0
    %245 = vmatprep.subr.mxu0 0.0
    %246 = vmatpush2.msra.mxu0 0.0
    %247 = vmatprep.subr.mxu0 0.0
    %248 = vmatpush2.msra.mxu0 0.0
    %249 = vmatprep.subr.mxu0 0.0
    %250 = vmatpush2.msra.mxu0 0.0
    %251 = vmatprep.subr.mxu0 0.0
    %252 = vmatpush2.msra.mxu0 0.0
    %253 = vmatprep.subr.mxu0 0.0
    %254 = vmatpush2.msra.mxu0 0.0
    %255 = vmatprep.subr.mxu0 0.0
    %256 = vmatpush2.msra.mxu0 0.0
    %257 = vmatprep.subr.mxu0 0.0
    %258 = vmatpush2.msra.mxu0 0.0
    %259 = vmatprep.subr.mxu0 0.0
    %260 = vmatpush2.msra.mxu0 0.0
    %261 = vmatprep.mubr.f32.mxu0 0.0
    %262 = vmatmul.mubr.f32.gmra.mxu0 %v124
    %v263 = vpop.f32.mrf.mxu0
    %v264 = vadd.f32 %v113, %v263
    %v265 = vpop.f32.mrf.mxu0
    %v266 = vadd.f32 %v117, %v265
    %267 = vdwg.mxu0
    %v268 = vtanh.pop %v193
    %v269 = vtanh.pop %v195
    %v270 = vtanh.pop %v264
    %v271 = vtanh.pop %v266
    %v272 = vld [vmem:[#allocation8] sm:$0xff]
    %v273 = vld [vmem:[#allocation8 + $0x8] sm:$0xff]
    %v274 = vld [vmem:[#allocation8 + $0x10] sm:$0xff]
    %v275 = vld [vmem:[#allocation8 + $0x18] sm:$0xff]
    %v276 = vld [vmem:[#allocation8 + $0x20] sm:$0xff]
    %v277 = vld [vmem:[#allocation8 + $0x28] sm:$0xff]
    %v278 = vld [vmem:[#allocation8 + $0x30] sm:$0xff]
    %v279 = vld [vmem:[#allocation8 + $0x38] sm:$0xff]
    %v280 = vld [vmem:[#allocation8 + $0x40] sm:$0xff]
    %v281 = vld [vmem:[#allocation8 + $0x48] sm:$0xff]
    %v282 = vld [vmem:[#allocation8 + $0x50] sm:$0xff]
    %v283 = vld [vmem:[#allocation8 + $0x58] sm:$0xff]
    %v284 = vld [vmem:[#allocation8 + $0x60] sm:$0xff]
    %v285 = vld [vmem:[#allocation8 + $0x68] sm:$0xff]
    %v286 = vld [vmem:[#allocation8 + $0x70] sm:$0xff]
    %v287 = vld [vmem:[#allocation8 + $0x78] sm:$0xff]
    %v288 = vld [vmem:[#allocation8 + $0x80] sm:$0xff]
    %v289 = vld [vmem:[#allocation8 + $0x88] sm:$0xff]
    %v290 = vld [vmem:[#allocation8 + $0x90] sm:$0xff]
    %v291 = vld [vmem:[#allocation8 + $0x98] sm:$0xff]
    %v292 = vld [vmem:[#allocation8 + $0xa0] sm:$0xff]
    %v293 = vld [vmem:[#allocation8 + $0xa8] sm:$0xff]
    %v294 = vld [vmem:[#allocation8 + $0xb0] sm:$0xff]
    %v295 = vld [vmem:[#allocation8 + $0xb8] sm:$0xff]
    %v296 = vld [vmem:[#allocation8 + $0xc0] sm:$0xff]
    %v297 = vld [vmem:[#allocation8 + $0xc8] sm:$0xff]
    %v298 = vld [vmem:[#allocation8 + $0xd0] sm:$0xff]
    %v299 = vld [vmem:[#allocation8 + $0xd8] sm:$0xff]
    %v300 = vld [vmem:[#allocation8 + $0xe0] sm:$0xff]
    %v301 = vld [vmem:[#allocation8 + $0xe8] sm:$0xff]
    %v302 = vld [vmem:[#allocation8 + $0xf0] sm:$0xff]
    %v303 = vld [vmem:[#allocation8 + $0xf8] sm:$0xff]
    %v304 = vld [vmem:[#allocation8 + $0x100] sm:$0xff]
    %v305 = vld [vmem:[#allocation8 + $0x108] sm:$0xff]
    %v306 = vld [vmem:[#allocation8 + $0x110] sm:$0xff]
    %v307 = vld [vmem:[#allocation8 + $0x118] sm:$0xff]
    %v308 = vld [vmem:[#allocation8 + $0x120] sm:$0xff]
    %v309 = vld [vmem:[#allocation8 + $0x128] sm:$0xff]
    %v310 = vld [vmem:[#allocation8 + $0x130] sm:$0xff]
    %v311 = vld [vmem:[#allocation8 + $0x138] sm:$0xff]
    %v312 = vld [vmem:[#allocation8 + $0x140] sm:$0xff]
    %v313 = vld [vmem:[#allocation8 + $0x148] sm:$0xff]
    %v314 = vld [vmem:[#allocation8 + $0x150] sm:$0xff]
    %v315 = vld [vmem:[#allocation8 + $0x158] sm:$0xff]
    %v316 = vld [vmem:[#allocation8 + $0x160] sm:$0xff]
    %v317 = vld [vmem:[#allocation8 + $0x168] sm:$0xff]
    %v318 = vld [vmem:[#allocation8 + $0x170] sm:$0xff]
    %v319 = vld [vmem:[#allocation8 + $0x178] sm:$0xff]
    %v320 = vld [vmem:[#allocation8 + $0x180] sm:$0xff]
    %v321 = vld [vmem:[#allocation8 + $0x188] sm:$0xff]
    %v322 = vld [vmem:[#allocation8 + $0x190] sm:$0xff]
    %v323 = vld [vmem:[#allocation8 + $0x198] sm:$0xff]
    %v324 = vld [vmem:[#allocation8 + $0x1a0] sm:$0xff]
    %v325 = vld [vmem:[#allocation8 + $0x1a8] sm:$0xff]
    %v326 = vld [vmem:[#allocation8 + $0x1b0] sm:$0xff]
    %v327 = vld [vmem:[#allocation8 + $0x1b8] sm:$0xff]
    %v328 = vld [vmem:[#allocation8 + $0x1c0] sm:$0xff]
    %v329 = vld [vmem:[#allocation8 + $0x1c8] sm:$0xff]
    %v330 = vld [vmem:[#allocation8 + $0x1d0] sm:$0xff]
    %v331 = vld [vmem:[#allocation8 + $0x1d8] sm:$0xff]
    %v332 = vld [vmem:[#allocation8 + $0x1e0] sm:$0xff]
    %v333 = vld [vmem:[#allocation8 + $0x1e8] sm:$0xff]
    %v334 = vld [vmem:[#allocation8 + $0x1f0] sm:$0xff]
    %v335 = vld [vmem:[#allocation8 + $0x1f8] sm:$0xff]
    %v336 = vld [vmem:[#allocation8 + $0x200] sm:$0xff]
    %v337 = vld [vmem:[#allocation8 + $0x208] sm:$0xff]
    %v338 = vld [vmem:[#allocation8 + $0x210] sm:$0xff]
    %v339 = vld [vmem:[#allocation8 + $0x218] sm:$0xff]
    %v340 = vld [vmem:[#allocation8 + $0x220] sm:$0xff]
    %v341 = vld [vmem:[#allocation8 + $0x228] sm:$0xff]
    %v342 = vld [vmem:[#allocation8 + $0x230] sm:$0xff]
    %v343 = vld [vmem:[#allocation8 + $0x238] sm:$0xff]
    %v344 = vld [vmem:[#allocation8 + $0x240] sm:$0xff]
    %v345 = vld [vmem:[#allocation8 + $0x248] sm:$0xff]
    %v346 = vld [vmem:[#allocation8 + $0x250] sm:$0xff]
    %v347 = vld [vmem:[#allocation8 + $0x258] sm:$0xff]
    %v348 = vld [vmem:[#allocation8 + $0x260] sm:$0xff]
    %v349 = vld [vmem:[#allocation8 + $0x268] sm:$0xff]
    %v350 = vld [vmem:[#allocation8 + $0x270] sm:$0xff]
    %v351 = vld [vmem:[#allocation8 + $0x278] sm:$0xff]
    %v352 = vld [vmem:[#allocation8 + $0x280] sm:$0xff]
    %v353 = vld [vmem:[#allocation8 + $0x288] sm:$0xff]
    %v354 = vld [vmem:[#allocation8 + $0x290] sm:$0xff]
    %v355 = vld [vmem:[#allocation8 + $0x298] sm:$0xff]
    %v356 = vld [vmem:[#allocation8 + $0x2a0] sm:$0xff]
    %v357 = vld [vmem:[#allocation8 + $0x2a8] sm:$0xff]
    %v358 = vld [vmem:[#allocation8 + $0x2b0] sm:$0xff]
    %v359 = vld [vmem:[#allocation8 + $0x2b8] sm:$0xff]
    %v360 = vld [vmem:[#allocation8 + $0x2c0] sm:$0xff]
    %v361 = vld [vmem:[#allocation8 + $0x2c8] sm:$0xff]
    %v362 = vld [vmem:[#allocation8 + $0x2d0] sm:$0xff]
    %v363 = vld [vmem:[#allocation8 + $0x2d8] sm:$0xff]
    %v364 = vld [vmem:[#allocation8 + $0x2e0] sm:$0xff]
    %v365 = vld [vmem:[#allocation8 + $0x2e8] sm:$0xff]
    %v366 = vld [vmem:[#allocation8 + $0x2f0] sm:$0xff]
    %v367 = vld [vmem:[#allocation8 + $0x2f8] sm:$0xff]
    %v368 = vld [vmem:[#allocation8 + $0x300] sm:$0xff]
    %v369 = vld [vmem:[#allocation8 + $0x308] sm:$0xff]
    %v370 = vld [vmem:[#allocation8 + $0x310] sm:$0xff]
    %v371 = vld [vmem:[#allocation8 + $0x318] sm:$0xff]
    %v372 = vld [vmem:[#allocation8 + $0x320] sm:$0xff]
    %v373 = vld [vmem:[#allocation8 + $0x328] sm:$0xff]
    %v374 = vld [vmem:[#allocation8 + $0x330] sm:$0xff]
    %v375 = vld [vmem:[#allocation8 + $0x338] sm:$0xff]
    %v376 = vld [vmem:[#allocation8 + $0x340] sm:$0xff]
    %v377 = vld [vmem:[#allocation8 + $0x348] sm:$0xff]
    %v378 = vld [vmem:[#allocation8 + $0x350] sm:$0xff]
    %v379 = vld [vmem:[#allocation8 + $0x358] sm:$0xff]
    %v380 = vld [vmem:[#allocation8 + $0x360] sm:$0xff]
    %v381 = vld [vmem:[#allocation8 + $0x368] sm:$0xff]
    %v382 = vld [vmem:[#allocation8 + $0x370] sm:$0xff]
    %v383 = vld [vmem:[#allocation8 + $0x378] sm:$0xff]
    %v384 = vld [vmem:[#allocation8 + $0x380] sm:$0xff]
    %v385 = vld [vmem:[#allocation8 + $0x388] sm:$0xff]
    %v386 = vld [vmem:[#allocation8 + $0x390] sm:$0xff]
    %v387 = vld [vmem:[#allocation8 + $0x398] sm:$0xff]
    %v388 = vld [vmem:[#allocation8 + $0x3a0] sm:$0xff]
    %v389 = vld [vmem:[#allocation8 + $0x3a8] sm:$0xff]
    %v390 = vld [vmem:[#allocation8 + $0x3b0] sm:$0xff]
    %v391 = vld [vmem:[#allocation8 + $0x3b8] sm:$0xff]
    %v392 = vld [vmem:[#allocation8 + $0x3c0] sm:$0xff]
    %v393 = vld [vmem:[#allocation8 + $0x3c8] sm:$0xff]
    %v394 = vld [vmem:[#allocation8 + $0x3d0] sm:$0xff]
    %v395 = vld [vmem:[#allocation8 + $0x3d8] sm:$0xff]
    %v396 = vld [vmem:[#allocation8 + $0x3e0] sm:$0xff]
    %v397 = vld [vmem:[#allocation8 + $0x3e8] sm:$0xff]
    %v398 = vld [vmem:[#allocation8 + $0x3f0] sm:$0xff]
    %v399 = vld [vmem:[#allocation8 + $0x3f8] sm:$0xff]
    %v400 = vld [vmem:[#allocation8 + $0x400] sm:$0xff]
    %v401 = vld [vmem:[#allocation8 + $0x408] sm:$0xff]
    %v402 = vld [vmem:[#allocation8 + $0x410] sm:$0xff]
    %v403 = vld [vmem:[#allocation8 + $0x418] sm:$0xff]
    %v404 = vld [vmem:[#allocation8 + $0x420] sm:$0xff]
    %v405 = vld [vmem:[#allocation8 + $0x428] sm:$0xff]
    %v406 = vld [vmem:[#allocation8 + $0x430] sm:$0xff]
    %v407 = vld [vmem:[#allocation8 + $0x438] sm:$0xff]
    %v408 = vld [vmem:[#allocation8 + $0x440] sm:$0xff]
    %v409 = vld [vmem:[#allocation8 + $0x448] sm:$0xff]
    %v410 = vld [vmem:[#allocation8 + $0x450] sm:$0xff]
    %v411 = vld [vmem:[#allocation8 + $0x458] sm:$0xff]
    %v412 = vld [vmem:[#allocation8 + $0x460] sm:$0xff]
    %v413 = vld [vmem:[#allocation8 + $0x468] sm:$0xff]
    %v414 = vld [vmem:[#allocation8 + $0x470] sm:$0xff]
    %v415 = vld [vmem:[#allocation8 + $0x478] sm:$0xff]
    %v416 = vld [vmem:[#allocation8 + $0x480] sm:$0xff]
    %v417 = vld [vmem:[#allocation8 + $0x488] sm:$0xff]
    %v418 = vld [vmem:[#allocation8 + $0x490] sm:$0xff]
    %v419 = vld [vmem:[#allocation8 + $0x498] sm:$0xff]
    %v420 = vld [vmem:[#allocation8 + $0x4a0] sm:$0xff]
    %v421 = vld [vmem:[#allocation8 + $0x4a8] sm:$0xff]
    %v422 = vld [vmem:[#allocation8 + $0x4b0] sm:$0xff]
    %v423 = vld [vmem:[#allocation8 + $0x4b8] sm:$0xff]
    %v424 = vld [vmem:[#allocation8 + $0x4c0] sm:$0xff]
    %v425 = vld [vmem:[#allocation8 + $0x4c8] sm:$0xff]
    %v426 = vld [vmem:[#allocation8 + $0x4d0] sm:$0xff]
    %v427 = vld [vmem:[#allocation8 + $0x4d8] sm:$0xff]
    %v428 = vld [vmem:[#allocation8 + $0x4e0] sm:$0xff]
    %v429 = vld [vmem:[#allocation8 + $0x4e8] sm:$0xff]
    %v430 = vld [vmem:[#allocation8 + $0x4f0] sm:$0xff]
    %v431 = vld [vmem:[#allocation8 + $0x4f8] sm:$0xff]
    %v432 = vld [vmem:[#allocation8 + $0x500] sm:$0xff]
    %v433 = vld [vmem:[#allocation8 + $0x508] sm:$0xff]
    %v434 = vld [vmem:[#allocation8 + $0x510] sm:$0xff]
    %v435 = vld [vmem:[#allocation8 + $0x518] sm:$0xff]
    %v436 = vld [vmem:[#allocation8 + $0x520] sm:$0xff]
    %v437 = vld [vmem:[#allocation8 + $0x528] sm:$0xff]
    %v438 = vld [vmem:[#allocation8 + $0x530] sm:$0xff]
    %v439 = vld [vmem:[#allocation8 + $0x538] sm:$0xff]
    %v440 = vld [vmem:[#allocation8 + $0x540] sm:$0xff]
    %v441 = vld [vmem:[#allocation8 + $0x548] sm:$0xff]
    %v442 = vld [vmem:[#allocation8 + $0x550] sm:$0xff]
    %v443 = vld [vmem:[#allocation8 + $0x558] sm:$0xff]
    %v444 = vld [vmem:[#allocation8 + $0x560] sm:$0xff]
    %v445 = vld [vmem:[#allocation8 + $0x568] sm:$0xff]
    %v446 = vld [vmem:[#allocation8 + $0x570] sm:$0xff]
    %v447 = vld [vmem:[#allocation8 + $0x578] sm:$0xff]
    %v448 = vld [vmem:[#allocation8 + $0x580] sm:$0xff]
    %v449 = vld [vmem:[#allocation8 + $0x588] sm:$0xff]
    %v450 = vld [vmem:[#allocation8 + $0x590] sm:$0xff]
    %v451 = vld [vmem:[#allocation8 + $0x598] sm:$0xff]
    %v452 = vld [vmem:[#allocation8 + $0x5a0] sm:$0xff]
    %v453 = vld [vmem:[#allocation8 + $0x5a8] sm:$0xff]
    %v454 = vld [vmem:[#allocation8 + $0x5b0] sm:$0xff]
    %v455 = vld [vmem:[#allocation8 + $0x5b8] sm:$0xff]
    %v456 = vld [vmem:[#allocation8 + $0x5c0] sm:$0xff]
    %v457 = vld [vmem:[#allocation8 + $0x5c8] sm:$0xff]
    %v458 = vld [vmem:[#allocation8 + $0x5d0] sm:$0xff]
    %v459 = vld [vmem:[#allocation8 + $0x5d8] sm:$0xff]
    %v460 = vld [vmem:[#allocation8 + $0x5e0] sm:$0xff]
    %v461 = vld [vmem:[#allocation8 + $0x5e8] sm:$0xff]
    %v462 = vld [vmem:[#allocation8 + $0x5f0] sm:$0xff]
    %v463 = vld [vmem:[#allocation8 + $0x5f8] sm:$0xff]
    %v464 = vld [vmem:[#allocation8 + $0x600] sm:$0xff]
    %v465 = vld [vmem:[#allocation8 + $0x608] sm:$0xff]
    %v466 = vld [vmem:[#allocation8 + $0x610] sm:$0xff]
    %v467 = vld [vmem:[#allocation8 + $0x618] sm:$0xff]
    %v468 = vld [vmem:[#allocation8 + $0x620] sm:$0xff]
    %v469 = vld [vmem:[#allocation8 + $0x628] sm:$0xff]
    %v470 = vld [vmem:[#allocation8 + $0x630] sm:$0xff]
    %v471 = vld [vmem:[#allocation8 + $0x638] sm:$0xff]
    %v472 = vld [vmem:[#allocation8 + $0x640] sm:$0xff]
    %v473 = vld [vmem:[#allocation8 + $0x648] sm:$0xff]
    %v474 = vld [vmem:[#allocation8 + $0x650] sm:$0xff]
    %v475 = vld [vmem:[#allocation8 + $0x658] sm:$0xff]
    %v476 = vld [vmem:[#allocation8 + $0x660] sm:$0xff]
    %v477 = vld [vmem:[#allocation8 + $0x668] sm:$0xff]
    %v478 = vld [vmem:[#allocation8 + $0x670] sm:$0xff]
    %v479 = vld [vmem:[#allocation8 + $0x678] sm:$0xff]
    %v480 = vld [vmem:[#allocation8 + $0x680] sm:$0xff]
    %v481 = vld [vmem:[#allocation8 + $0x688] sm:$0xff]
    %v482 = vld [vmem:[#allocation8 + $0x690] sm:$0xff]
    %v483 = vld [vmem:[#allocation8 + $0x698] sm:$0xff]
    %v484 = vld [vmem:[#allocation8 + $0x6a0] sm:$0xff]
    %v485 = vld [vmem:[#allocation8 + $0x6a8] sm:$0xff]
    %v486 = vld [vmem:[#allocation8 + $0x6b0] sm:$0xff]
    %v487 = vld [vmem:[#allocation8 + $0x6b8] sm:$0xff]
    %v488 = vld [vmem:[#allocation8 + $0x6c0] sm:$0xff]
    %v489 = vld [vmem:[#allocation8 + $0x6c8] sm:$0xff]
    %v490 = vld [vmem:[#allocation8 + $0x6d0] sm:$0xff]
    %v491 = vld [vmem:[#allocation8 + $0x6d8] sm:$0xff]
    %v492 = vld [vmem:[#allocation8 + $0x6e0] sm:$0xff]
    %v493 = vld [vmem:[#allocation8 + $0x6e8] sm:$0xff]
    %v494 = vld [vmem:[#allocation8 + $0x6f0] sm:$0xff]
    %v495 = vld [vmem:[#allocation8 + $0x6f8] sm:$0xff]
    %v496 = vld [vmem:[#allocation8 + $0x700] sm:$0xff]
    %v497 = vld [vmem:[#allocation8 + $0x708] sm:$0xff]
    %v498 = vld [vmem:[#allocation8 + $0x710] sm:$0xff]
    %v499 = vld [vmem:[#allocation8 + $0x718] sm:$0xff]
    %v500 = vld [vmem:[#allocation8 + $0x720] sm:$0xff]
    %v501 = vld [vmem:[#allocation8 + $0x728] sm:$0xff]
    %v502 = vld [vmem:[#allocation8 + $0x730] sm:$0xff]
    %v503 = vld [vmem:[#allocation8 + $0x738] sm:$0xff]
    %v504 = vld [vmem:[#allocation8 + $0x740] sm:$0xff]
    %v505 = vld [vmem:[#allocation8 + $0x748] sm:$0xff]
    %v506 = vld [vmem:[#allocation8 + $0x750] sm:$0xff]
    %v507 = vld [vmem:[#allocation8 + $0x758] sm:$0xff]
    %v508 = vld [vmem:[#allocation8 + $0x760] sm:$0xff]
    %v509 = vld [vmem:[#allocation8 + $0x768] sm:$0xff]
    %v510 = vld [vmem:[#allocation8 + $0x770] sm:$0xff]
    %v511 = vld [vmem:[#allocation8 + $0x778] sm:$0xff]
    %v512 = vld [vmem:[#allocation8 + $0x780] sm:$0xff]
    %v513 = vld [vmem:[#allocation8 + $0x788] sm:$0xff]
    %v514 = vld [vmem:[#allocation8 + $0x790] sm:$0xff]
    %v515 = vld [vmem:[#allocation8 + $0x798] sm:$0xff]
    %v516 = vld [vmem:[#allocation8 + $0x7a0] sm:$0xff]
    %v517 = vld [vmem:[#allocation8 + $0x7a8] sm:$0xff]
    %v518 = vld [vmem:[#allocation8 + $0x7b0] sm:$0xff]
    %v519 = vld [vmem:[#allocation8 + $0x7b8] sm:$0xff]
    %v520 = vld [vmem:[#allocation8 + $0x7c0] sm:$0xff]
    %v521 = vld [vmem:[#allocation8 + $0x7c8] sm:$0xff]
    %v522 = vld [vmem:[#allocation8 + $0x7d0] sm:$0xff]
    %v523 = vld [vmem:[#allocation8 + $0x7d8] sm:$0xff]
    %v524 = vld [vmem:[#allocation8 + $0x7e0] sm:$0xff]
    %v525 = vld [vmem:[#allocation8 + $0x7e8] sm:$0xff]
    %v526 = vld [vmem:[#allocation8 + $0x7f0] sm:$0xff]
    %v527 = vld [vmem:[#allocation8 + $0x7f8] sm:$0xff]
    %v528 = vld [vmem:[%s4] sm:$0xf]
    %v530 = vlaneseq
    %v531 = vshrl.u32 %v530, 7
    %v532 = vsub.s32 0, %v531
    %v533 = vrot.slane %v528, %v532
    %v534 = vlaneseq
    %v535 = vshrl.u32 %v534, 7
    %v536 = vsub.s32 1, %v535
    %v537 = vrot.slane %v528, %v536
    %v538 = vlaneseq
    %v539 = vshrl.u32 %v538, 7
    %v540 = vsub.s32 2, %v539
    %v541 = vrot.slane %v528, %v540
    %v542 = vlaneseq
    %v543 = vshrl.u32 %v542, 7
    %v544 = vsub.s32 3, %v543
    %v545 = vrot.slane %v528, %v544
    %550 = vmatprep.subr.mxu0 %v333
    %551 = vmatpush1.msra.mxu0 %v332
    %552 = vmatprep.subr.mxu0 %v329
    %553 = vmatpush1.msra.mxu0 %v328
    %554 = vmatprep.subr.mxu0 %v325
    %555 = vmatpush1.msra.mxu0 %v324
    %556 = vmatprep.subr.mxu0 %v321
    %557 = vmatpush1.msra.mxu0 %v320
    %558 = vmatprep.subr.mxu0 %v317
    %559 = vmatpush1.msra.mxu0 %v316
    %560 = vmatprep.subr.mxu0 %v313
    %561 = vmatpush1.msra.mxu0 %v312
    %562 = vmatprep.subr.mxu0 %v309
    %563 = vmatpush1.msra.mxu0 %v308
    %564 = vmatprep.subr.mxu0 %v305
    %565 = vmatpush1.msra.mxu0 %v304
    %566 = vmatprep.subr.mxu0 %v301
    %567 = vmatpush1.msra.mxu0 %v300
    %568 = vmatprep.subr.mxu0 %v297
    %569 = vmatpush1.msra.mxu0 %v296
    %570 = vmatprep.subr.mxu0 %v293
    %571 = vmatpush1.msra.mxu0 %v292
    %572 = vmatprep.subr.mxu0 %v289
    %573 = vmatpush1.msra.mxu0 %v288
    %574 = vmatprep.subr.mxu0 %v285
    %575 = vmatpush1.msra.mxu0 %v284
    %576 = vmatprep.subr.mxu0 %v281
    %577 = vmatpush1.msra.mxu0 %v280
    %578 = vmatprep.subr.mxu0 %v277
    %579 = vmatpush1.msra.mxu0 %v276
    %580 = vmatprep.subr.mxu0 %v273
    %581 = vmatpush1.msra.mxu0 %v272
    %582 = vmatprep.subr.mxu0 %v397
    %583 = vmatpush2.msra.mxu0 %v396
    %584 = vmatprep.subr.mxu0 %v393
    %585 = vmatpush2.msra.mxu0 %v392
    %586 = vmatprep.subr.mxu0 %v389
    %587 = vmatpush2.msra.mxu0 %v388
    %588 = vmatprep.subr.mxu0 %v385
    %589 = vmatpush2.msra.mxu0 %v384
    %590 = vmatprep.subr.mxu0 %v381
    %591 = vmatpush2.msra.mxu0 %v380
    %592 = vmatprep.subr.mxu0 %v377
    %593 = vmatpush2.msra.mxu0 %v376
    %594 = vmatprep.subr.mxu0 %v373
    %595 = vmatpush2.msra.mxu0 %v372
    %596 = vmatprep.subr.mxu0 %v369
    %597 = vmatpush2.msra.mxu0 %v368
    %598 = vmatprep.subr.mxu0 %v365
    %599 = vmatpush2.msra.mxu0 %v364
    %600 = vmatprep.subr.mxu0 %v361
    %601 = vmatpush2.msra.mxu0 %v360
    %602 = vmatprep.subr.mxu0 %v357
    %603 = vmatpush2.msra.mxu0 %v356
    %604 = vmatprep.subr.mxu0 %v353
    %605 = vmatpush2.msra.mxu0 %v352
    %606 = vmatprep.subr.mxu0 %v349
    %607 = vmatpush2.msra.mxu0 %v348
    %608 = vmatprep.subr.mxu0 %v345
    %609 = vmatpush2.msra.mxu0 %v344
    %610 = vmatprep.subr.mxu0 %v341
    %611 = vmatpush2.msra.mxu0 %v340
    %612 = vmatprep.subr.mxu0 %v337
    %613 = vmatpush2.msra.mxu0 %v336
    %614 = vmatprep.mubr.f32.mxu0 %v269
    %615 = vmatmul.mubr.f32.gmra.mxu0 %v268
    %v616 = vpop.f32.mrf.mxu0
    %v617 = vadd.f32 %v533, %v616
    %v618 = vpop.f32.mrf.mxu0
    %v619 = vadd.f32 %v537, %v618
    %620 = vdwg.mxu0
    %621 = vmatprep.subr.mxu0 %v461
    %622 = vmatpush1.msra.mxu0 %v460
    %623 = vmatprep.subr.mxu0 %v457
    %624 = vmatpush1.msra.mxu0 %v456
    %625 = vmatprep.subr.mxu0 %v453
    %626 = vmatpush1.msra.mxu0 %v452
    %627 = vmatprep.subr.mxu0 %v449
    %628 = vmatpush1.msra.mxu0 %v448
    %629 = vmatprep.subr.mxu0 %v445
    %630 = vmatpush1.msra.mxu0 %v444
    %631 = vmatprep.subr.mxu0 %v441
    %632 = vmatpush1.msra.mxu0 %v440
    %633 = vmatprep.subr.mxu0 %v437
    %634 = vmatpush1.msra.mxu0 %v436
    %635 = vmatprep.subr.mxu0 %v433
    %636 = vmatpush1.msra.mxu0 %v432
    %637 = vmatprep.subr.mxu0 %v429
    %638 = vmatpush1.msra.mxu0 %v428
    %639 = vmatprep.subr.mxu0 %v425
    %640 = vmatpush1.msra.mxu0 %v424
    %641 = vmatprep.subr.mxu0 %v421
    %642 = vmatpush1.msra.mxu0 %v420
    %643 = vmatprep.subr.mxu0 %v417
    %644 = vmatpush1.msra.mxu0 %v416
    %645 = vmatprep.subr.mxu0 %v413
    %646 = vmatpush1.msra.mxu0 %v412
    %647 = vmatprep.subr.mxu0 %v409
    %648 = vmatpush1.msra.mxu0 %v408
    %649 = vmatprep.subr.mxu0 %v405
    %650 = vmatpush1.msra.mxu0 %v404
    %651 = vmatprep.subr.mxu0 %v401
    %652 = vmatpush1.msra.mxu0 %v400
    %653 = vmatprep.subr.mxu0 %v525
    %654 = vmatpush2.msra.mxu0 %v524
    %655 = vmatprep.subr.mxu0 %v521
    %656 = vmatpush2.msra.mxu0 %v520
    %657 = vmatprep.subr.mxu0 %v517
    %658 = vmatpush2.msra.mxu0 %v516
    %659 = vmatprep.subr.mxu0 %v513
    %660 = vmatpush2.msra.mxu0 %v512
    %661 = vmatprep.subr.mxu0 %v509
    %662 = vmatpush2.msra.mxu0 %v508
    %663 = vmatprep.subr.mxu0 %v505
    %664 = vmatpush2.msra.mxu0 %v504
    %665 = vmatprep.subr.mxu0 %v501
    %666 = vmatpush2.msra.mxu0 %v500
    %667 = vmatprep.subr.mxu0 %v497
    %668 = vmatpush2.msra.mxu0 %v496
    %669 = vmatprep.subr.mxu0 %v493
    %670 = vmatpush2.msra.mxu0 %v492
    %671 = vmatprep.subr.mxu0 %v489
    %672 = vmatpush2.msra.mxu0 %v488
    %673 = vmatprep.subr.mxu0 %v485
    %674 = vmatpush2.msra.mxu0 %v484
    %675 = vmatprep.subr.mxu0 %v481
    %676 = vmatpush2.msra.mxu0 %v480
    %677 = vmatprep.subr.mxu0 %v477
    %678 = vmatpush2.msra.mxu0 %v476
    %679 = vmatprep.subr.mxu0 %v473
    %680 = vmatpush2.msra.mxu0 %v472
    %681 = vmatprep.subr.mxu0 %v469
    %682 = vmatpush2.msra.mxu0 %v468
    %683 = vmatprep.subr.mxu0 %v465
    %684 = vmatpush2.msra.mxu0 %v464
    %685 = vmatprep.mubr.f32.mxu0 %v271
    %686 = vmatmul.mubr.f32.gmra.mxu0 %v270
    %v687 = vpop.f32.mrf.mxu0
    %v688 = vadd.f32 %v617, %v687
    %v689 = vpop.f32.mrf.mxu0
    %v690 = vadd.f32 %v619, %v689
    %691 = vdwg.mxu0
    %692 = vmatprep.subr.mxu0 %v335
    %693 = vmatpush1.msra.mxu0 %v334
    %694 = vmatprep.subr.mxu0 %v331
    %695 = vmatpush1.msra.mxu0 %v330
    %696 = vmatprep.subr.mxu0 %v327
    %697 = vmatpush1.msra.mxu0 %v326
    %698 = vmatprep.subr.mxu0 %v323
    %699 = vmatpush1.msra.mxu0 %v322
    %700 = vmatprep.subr.mxu0 %v319
    %701 = vmatpush1.msra.mxu0 %v318
    %702 = vmatprep.subr.mxu0 %v315
    %703 = vmatpush1.msra.mxu0 %v314
    %704 = vmatprep.subr.mxu0 %v311
    %705 = vmatpush1.msra.mxu0 %v310
    %706 = vmatprep.subr.mxu0 %v307
    %707 = vmatpush1.msra.mxu0 %v306
    %708 = vmatprep.subr.mxu0 %v303
    %709 = vmatpush1.msra.mxu0 %v302
    %710 = vmatprep.subr.mxu0 %v299
    %711 = vmatpush1.msra.mxu0 %v298
    %712 = vmatprep.subr.mxu0 %v295
    %713 = vmatpush1.msra.mxu0 %v294
    %714 = vmatprep.subr.mxu0 %v291
    %715 = vmatpush1.msra.mxu0 %v290
    %716 = vmatprep.subr.mxu0 %v287
    %717 = vmatpush1.msra.mxu0 %v286
    %718 = vmatprep.subr.mxu0 %v283
    %719 = vmatpush1.msra.mxu0 %v282
    %720 = vmatprep.subr.mxu0 %v279
    %721 = vmatpush1.msra.mxu0 %v278
    %722 = vmatprep.subr.mxu0 %v275
    %723 = vmatpush1.msra.mxu0 %v274
    %724 = vmatprep.subr.mxu0 %v399
    %725 = vmatpush2.msra.mxu0 %v398
    %726 = vmatprep.subr.mxu0 %v395
    %727 = vmatpush2.msra.mxu0 %v394
    %728 = vmatprep.subr.mxu0 %v391
    %729 = vmatpush2.msra.mxu0 %v390
    %730 = vmatprep.subr.mxu0 %v387
    %731 = vmatpush2.msra.mxu0 %v386
    %732 = vmatprep.subr.mxu0 %v383
    %733 = vmatpush2.msra.mxu0 %v382
    %734 = vmatprep.subr.mxu0 %v379
    %735 = vmatpush2.msra.mxu0 %v378
    %736 = vmatprep.subr.mxu0 %v375
    %737 = vmatpush2.msra.mxu0 %v374
    %738 = vmatprep.subr.mxu0 %v371
    %739 = vmatpush2.msra.mxu0 %v370
    %740 = vmatprep.subr.mxu0 %v367
    %741 = vmatpush2.msra.mxu0 %v366
    %742 = vmatprep.subr.mxu0 %v363
    %743 = vmatpush2.msra.mxu0 %v362
    %744 = vmatprep.subr.mxu0 %v359
    %745 = vmatpush2.msra.mxu0 %v358
    %746 = vmatprep.subr.mxu0 %v355
    %747 = vmatpush2.msra.mxu0 %v354
    %748 = vmatprep.subr.mxu0 %v351
    %749 = vmatpush2.msra.mxu0 %v350
    %750 = vmatprep.subr.mxu0 %v347
    %751 = vmatpush2.msra.mxu0 %v346
    %752 = vmatprep.subr.mxu0 %v343
    %753 = vmatpush2.msra.mxu0 %v342
    %754 = vmatprep.subr.mxu0 %v339
    %755 = vmatpush2.msra.mxu0 %v338
    %756 = vmatprep.mubr.f32.mxu0 %v269
    %757 = vmatmul.mubr.f32.gmra.mxu0 %v268
    %v758 = vpop.f32.mrf.mxu0
    %v759 = vadd.f32 %v541, %v758
    %v760 = vpop.f32.mrf.mxu0
    %v761 = vadd.f32 %v545, %v760
    %762 = vdwg.mxu0
    %763 = vmatprep.subr.mxu0 %v463
    %764 = vmatpush1.msra.mxu0 %v462
    %765 = vmatprep.subr.mxu0 %v459
    %766 = vmatpush1.msra.mxu0 %v458
    %767 = vmatprep.subr.mxu0 %v455
    %768 = vmatpush1.msra.mxu0 %v454
    %769 = vmatprep.subr.mxu0 %v451
    %770 = vmatpush1.msra.mxu0 %v450
    %771 = vmatprep.subr.mxu0 %v447
    %772 = vmatpush1.msra.mxu0 %v446
    %773 = vmatprep.subr.mxu0 %v443
    %774 = vmatpush1.msra.mxu0 %v442
    %775 = vmatprep.subr.mxu0 %v439
    %776 = vmatpush1.msra.mxu0 %v438
    %777 = vmatprep.subr.mxu0 %v435
    %778 = vmatpush1.msra.mxu0 %v434
    %779 = vmatprep.subr.mxu0 %v431
    %780 = vmatpush1.msra.mxu0 %v430
    %781 = vmatprep.subr.mxu0 %v427
    %782 = vmatpush1.msra.mxu0 %v426
    %783 = vmatprep.subr.mxu0 %v423
    %784 = vmatpush1.msra.mxu0 %v422
    %785 = vmatprep.subr.mxu0 %v419
    %786 = vmatpush1.msra.mxu0 %v418
    %787 = vmatprep.subr.mxu0 %v415
    %788 = vmatpush1.msra.mxu0 %v414
    %789 = vmatprep.subr.mxu0 %v411
    %790 = vmatpush1.msra.mxu0 %v410
    %791 = vmatprep.subr.mxu0 %v407
    %792 = vmatpush1.msra.mxu0 %v406
    %793 = vmatprep.subr.mxu0 %v403
    %794 = vmatpush1.msra.mxu0 %v402
    %795 = vmatprep.subr.mxu0 %v527
    %796 = vmatpush2.msra.mxu0 %v526
    %797 = vmatprep.subr.mxu0 %v523
    %798 = vmatpush2.msra.mxu0 %v522
    %799 = vmatprep.subr.mxu0 %v519
    %800 = vmatpush2.msra.mxu0 %v518
    %801 = vmatprep.subr.mxu0 %v515
    %802 = vmatpush2.msra.mxu0 %v514
    %803 = vmatprep.subr.mxu0 %v511
    %804 = vmatpush2.msra.mxu0 %v510
    %805 = vmatprep.subr.mxu0 %v507
    %806 = vmatpush2.msra.mxu0 %v506
    %807 = vmatprep.subr.mxu0 %v503
    %808 = vmatpush2.msra.mxu0 %v502
    %809 = vmatprep.subr.mxu0 %v499
    %810 = vmatpush2.msra.mxu0 %v498
    %811 = vmatprep.subr.mxu0 %v495
    %812 = vmatpush2.msra.mxu0 %v494
    %813 = vmatprep.subr.mxu0 %v491
    %814 = vmatpush2.msra.mxu0 %v490
    %815 = vmatprep.subr.mxu0 %v487
    %816 = vmatpush2.msra.mxu0 %v486
    %817 = vmatprep.subr.mxu0 %v483
    %818 = vmatpush2.msra.mxu0 %v482
    %819 = vmatprep.subr.mxu0 %v479
    %820 = vmatpush2.msra.mxu0 %v478
    %821 = vmatprep.subr.mxu0 %v475
    %822 = vmatpush2.msra.mxu0 %v474
    %823 = vmatprep.subr.mxu0 %v471
    %824 = vmatpush2.msra.mxu0 %v470
    %825 = vmatprep.subr.mxu0 %v467
    %826 = vmatpush2.msra.mxu0 %v466
    %827 = vmatprep.mubr.f32.mxu0 %v271
    %828 = vmatmul.mubr.f32.gmra.mxu0 %v270
    %v829 = vpop.f32.mrf.mxu0
    %v830 = vadd.f32 %v759, %v829
    %v831 = vpop.f32.mrf.mxu0
    %v832 = vadd.f32 %v761, %v831
    %833 = vdwg.mxu0
    %v834 = vtanh.pop %v688
    %v835 = vtanh.pop %v690
    %v836 = vtanh.pop %v830
    %v837 = vtanh.pop %v832
    %v838 = vld [vmem:[#allocation10] sm:$0xff]
    %v839 = vld [vmem:[#allocation10 + $0x8] sm:$0xff]
    %v840 = vld [vmem:[#allocation10 + $0x10] sm:$0xff]
    %v841 = vld [vmem:[#allocation10 + $0x18] sm:$0xff]
    %v842 = vld [vmem:[#allocation10 + $0x20] sm:$0xff]
    %v843 = vld [vmem:[#allocation10 + $0x28] sm:$0xff]
    %v844 = vld [vmem:[#allocation10 + $0x30] sm:$0xff]
    %v845 = vld [vmem:[#allocation10 + $0x38] sm:$0xff]
    %v846 = vld [vmem:[#allocation10 + $0x40] sm:$0xff]
    %v847 = vld [vmem:[#allocation10 + $0x48] sm:$0xff]
    %v848 = vld [vmem:[#allocation10 + $0x50] sm:$0xff]
    %v849 = vld [vmem:[#allocation10 + $0x58] sm:$0xff]
    %v850 = vld [vmem:[#allocation10 + $0x60] sm:$0xff]
    %v851 = vld [vmem:[#allocation10 + $0x68] sm:$0xff]
    %v852 = vld [vmem:[#allocation10 + $0x70] sm:$0xff]
    %v853 = vld [vmem:[#allocation10 + $0x78] sm:$0xff]
    %v854 = vld [vmem:[#allocation10 + $0x80] sm:$0xff]
    %v855 = vld [vmem:[#allocation10 + $0x88] sm:$0xff]
    %v856 = vld [vmem:[#allocation10 + $0x90] sm:$0xff]
    %v857 = vld [vmem:[#allocation10 + $0x98] sm:$0xff]
    %v858 = vld [vmem:[#allocation10 + $0xa0] sm:$0xff]
    %v859 = vld [vmem:[#allocation10 + $0xa8] sm:$0xff]
    %v860 = vld [vmem:[#allocation10 + $0xb0] sm:$0xff]
    %v861 = vld [vmem:[#allocation10 + $0xb8] sm:$0xff]
    %v862 = vld [vmem:[#allocation10 + $0xc0] sm:$0xff]
    %v863 = vld [vmem:[#allocation10 + $0xc8] sm:$0xff]
    %v864 = vld [vmem:[#allocation10 + $0xd0] sm:$0xff]
    %v865 = vld [vmem:[#allocation10 + $0xd8] sm:$0xff]
    %v866 = vld [vmem:[#allocation10 + $0xe0] sm:$0xff]
    %v867 = vld [vmem:[#allocation10 + $0xe8] sm:$0xff]
    %v868 = vld [vmem:[#allocation10 + $0xf0] sm:$0xff]
    %v869 = vld [vmem:[#allocation10 + $0xf8] sm:$0xff]
    %v870 = vld [vmem:[#allocation10 + $0x100] sm:$0xff]
    %v871 = vld [vmem:[#allocation10 + $0x108] sm:$0xff]
    %v872 = vld [vmem:[#allocation10 + $0x110] sm:$0xff]
    %v873 = vld [vmem:[#allocation10 + $0x118] sm:$0xff]
    %v874 = vld [vmem:[#allocation10 + $0x120] sm:$0xff]
    %v875 = vld [vmem:[#allocation10 + $0x128] sm:$0xff]
    %v876 = vld [vmem:[#allocation10 + $0x130] sm:$0xff]
    %v877 = vld [vmem:[#allocation10 + $0x138] sm:$0xff]
    %v878 = vld [vmem:[#allocation10 + $0x140] sm:$0xff]
    %v879 = vld [vmem:[#allocation10 + $0x148] sm:$0xff]
    %v880 = vld [vmem:[#allocation10 + $0x150] sm:$0xff]
    %v881 = vld [vmem:[#allocation10 + $0x158] sm:$0xff]
    %v882 = vld [vmem:[#allocation10 + $0x160] sm:$0xff]
    %v883 = vld [vmem:[#allocation10 + $0x168] sm:$0xff]
    %v884 = vld [vmem:[#allocation10 + $0x170] sm:$0xff]
    %v885 = vld [vmem:[#allocation10 + $0x178] sm:$0xff]
    %v886 = vld [vmem:[#allocation10 + $0x180] sm:$0xff]
    %v887 = vld [vmem:[#allocation10 + $0x188] sm:$0xff]
    %v888 = vld [vmem:[#allocation10 + $0x190] sm:$0xff]
    %v889 = vld [vmem:[#allocation10 + $0x198] sm:$0xff]
    %v890 = vld [vmem:[#allocation10 + $0x1a0] sm:$0xff]
    %v891 = vld [vmem:[#allocation10 + $0x1a8] sm:$0xff]
    %v892 = vld [vmem:[#allocation10 + $0x1b0] sm:$0xff]
    %v893 = vld [vmem:[#allocation10 + $0x1b8] sm:$0xff]
    %v894 = vld [vmem:[#allocation10 + $0x1c0] sm:$0xff]
    %v895 = vld [vmem:[#allocation10 + $0x1c8] sm:$0xff]
    %v896 = vld [vmem:[#allocation10 + $0x1d0] sm:$0xff]
    %v897 = vld [vmem:[#allocation10 + $0x1d8] sm:$0xff]
    %v898 = vld [vmem:[#allocation10 + $0x1e0] sm:$0xff]
    %v899 = vld [vmem:[#allocation10 + $0x1e8] sm:$0xff]
    %v900 = vld [vmem:[#allocation10 + $0x1f0] sm:$0xff]
    %v901 = vld [vmem:[#allocation10 + $0x1f8] sm:$0xff]
    %v902 = vld [vmem:[%s6] sm:$0x1]
    %v904 = vlaneseq
    %v905 = vshrl.u32 %v904, 7
    %v906 = vsub.s32 0, %v905
    %v907 = vrot.slane %v902, %v906
    %909 = vmatprep.subr.mxu0 0.0
    %910 = vmatpush1.msra.mxu0 %v853
    %911 = vmatprep.subr.mxu0 0.0
    %912 = vmatpush1.msra.mxu0 %v852
    %913 = vmatprep.subr.mxu0 0.0
    %914 = vmatpush1.msra.mxu0 %v851
    %915 = vmatprep.subr.mxu0 0.0
    %916 = vmatpush1.msra.mxu0 %v850
    %917 = vmatprep.subr.mxu0 0.0
    %918 = vmatpush1.msra.mxu0 %v849
    %919 = vmatprep.subr.mxu0 0.0
    %920 = vmatpush1.msra.mxu0 %v848
    %921 = vmatprep.subr.mxu0 0.0
    %922 = vmatpush1.msra.mxu0 %v847
    %923 = vmatprep.subr.mxu0 0.0
    %924 = vmatpush1.msra.mxu0 %v846
    %925 = vmatprep.subr.mxu0 0.0
    %926 = vmatpush1.msra.mxu0 %v845
    %927 = vmatprep.subr.mxu0 0.0
    %928 = vmatpush1.msra.mxu0 %v844
    %929 = vmatprep.subr.mxu0 0.0
    %930 = vmatpush1.msra.mxu0 %v843
    %931 = vmatprep.subr.mxu0 0.0
    %932 = vmatpush1.msra.mxu0 %v842
    %933 = vmatprep.subr.mxu0 0.0
    %934 = vmatpush1.msra.mxu0 %v841
    %935 = vmatprep.subr.mxu0 0.0
    %936 = vmatpush1.msra.mxu0 %v840
    %937 = vmatprep.subr.mxu0 0.0
    %938 = vmatpush1.msra.mxu0 %v839
    %939 = vmatprep.subr.mxu0 0.0
    %940 = vmatpush1.msra.mxu0 %v838
    %941 = vmatprep.subr.mxu0 0.0
    %942 = vmatpush2.msra.mxu0 %v869
    %943 = vmatprep.subr.mxu0 0.0
    %944 = vmatpush2.msra.mxu0 %v868
    %945 = vmatprep.subr.mxu0 0.0
    %946 = vmatpush2.msra.mxu0 %v867
    %947 = vmatprep.subr.mxu0 0.0
    %948 = vmatpush2.msra.mxu0 %v866
    %949 = vmatprep.subr.mxu0 0.0
    %950 = vmatpush2.msra.mxu0 %v865
    %951 = vmatprep.subr.mxu0 0.0
    %952 = vmatpush2.msra.mxu0 %v864
    %953 = vmatprep.subr.mxu0 0.0
    %954 = vmatpush2.msra.mxu0 %v863
    %955 = vmatprep.subr.mxu0 0.0
    %956 = vmatpush2.msra.mxu0 %v862
    %957 = vmatprep.subr.mxu0 0.0
    %958 = vmatpush2.msra.mxu0 %v861
    %959 = vmatprep.subr.mxu0 0.0
    %960 = vmatpush2.msra.mxu0 %v860
    %961 = vmatprep.subr.mxu0 0.0
    %962 = vmatpush2.msra.mxu0 %v859
    %963 = vmatprep.subr.mxu0 0.0
    %964 = vmatpush2.msra.mxu0 %v858
    %965 = vmatprep.subr.mxu0 0.0
    %966 = vmatpush2.msra.mxu0 %v857
    %967 = vmatprep.subr.mxu0 0.0
    %968 = vmatpush2.msra.mxu0 %v856
    %969 = vmatprep.subr.mxu0 0.0
    %970 = vmatpush2.msra.mxu0 %v855
    %971 = vmatprep.subr.mxu0 0.0
    %972 = vmatpush2.msra.mxu0 %v854
    %973 = vmatprep.mubr.f32.mxu0 %v835
    %974 = vmatmul.mubr.f32.gmra.mxu0 %v834
    %v975 = vpop.f32.mrf.mxu0
    %v976 = vadd.f32 %v907, %v975
    %v977 = vpop.f32.mrf.mxu0
    %978 = vdwg.mxu0
    %979 = vmatprep.subr.mxu0 0.0
    %980 = vmatpush1.msra.mxu0 %v885
    %981 = vmatprep.subr.mxu0 0.0
    %982 = vmatpush1.msra.mxu0 %v884
    %983 = vmatprep.subr.mxu0 0.0
    %984 = vmatpush1.msra.mxu0 %v883
    %985 = vmatprep.subr.mxu0 0.0
    %986 = vmatpush1.msra.mxu0 %v882
    %987 = vmatprep.subr.mxu0 0.0
    %988 = vmatpush1.msra.mxu0 %v881
    %989 = vmatprep.subr.mxu0 0.0
    %990 = vmatpush1.msra.mxu0 %v880
    %991 = vmatprep.subr.mxu0 0.0
    %992 = vmatpush1.msra.mxu0 %v879
    %993 = vmatprep.subr.mxu0 0.0
    %994 = vmatpush1.msra.mxu0 %v878
    %995 = vmatprep.subr.mxu0 0.0
    %996 = vmatpush1.msra.mxu0 %v877
    %997 = vmatprep.subr.mxu0 0.0
    %998 = vmatpush1.msra.mxu0 %v876
    %999 = vmatprep.subr.mxu0 0.0
    %1000 = vmatpush1.msra.mxu0 %v875
    %1001 = vmatprep.subr.mxu0 0.0
    %1002 = vmatpush1.msra.mxu0 %v874
    %1003 = vmatprep.subr.mxu0 0.0
    %1004 = vmatpush1.msra.mxu0 %v873
    %1005 = vmatprep.subr.mxu0 0.0
    %1006 = vmatpush1.msra.mxu0 %v872
    %1007 = vmatprep.subr.mxu0 0.0
    %1008 = vmatpush1.msra.mxu0 %v871
    %1009 = vmatprep.subr.mxu0 0.0
    %1010 = vmatpush1.msra.mxu0 %v870
    %1011 = vmatprep.subr.mxu0 0.0
    %1012 = vmatpush2.msra.mxu0 %v901
    %1013 = vmatprep.subr.mxu0 0.0
    %1014 = vmatpush2.msra.mxu0 %v900
    %1015 = vmatprep.subr.mxu0 0.0
    %1016 = vmatpush2.msra.mxu0 %v899
    %1017 = vmatprep.subr.mxu0 0.0
    %1018 = vmatpush2.msra.mxu0 %v898
    %1019 = vmatprep.subr.mxu0 0.0
    %1020 = vmatpush2.msra.mxu0 %v897
    %1021 = vmatprep.subr.mxu0 0.0
    %1022 = vmatpush2.msra.mxu0 %v896
    %1023 = vmatprep.subr.mxu0 0.0
    %1024 = vmatpush2.msra.mxu0 %v895
    %1025 = vmatprep.subr.mxu0 0.0
    %1026 = vmatpush2.msra.mxu0 %v894
    %1027 = vmatprep.subr.mxu0 0.0
    %1028 = vmatpush2.msra.mxu0 %v893
    %1029 = vmatprep.subr.mxu0 0.0
    %1030 = vmatpush2.msra.mxu0 %v892
    %1031 = vmatprep.subr.mxu0 0.0
    %1032 = vmatpush2.msra.mxu0 %v891
    %1033 = vmatprep.subr.mxu0 0.0
    %1034 = vmatpush2.msra.mxu0 %v890
    %1035 = vmatprep.subr.mxu0 0.0
    %1036 = vmatpush2.msra.mxu0 %v889
    %1037 = vmatprep.subr.mxu0 0.0
    %1038 = vmatpush2.msra.mxu0 %v888
    %1039 = vmatprep.subr.mxu0 0.0
    %1040 = vmatpush2.msra.mxu0 %v887
    %1041 = vmatprep.subr.mxu0 0.0
    %1042 = vmatpush2.msra.mxu0 %v886
    %1043 = vmatprep.mubr.f32.mxu0 %v837
    %1044 = vmatmul.mubr.f32.gmra.mxu0 %v836
    %v1045 = vpop.f32.mrf.mxu0
    %v1046 = vadd.f32 %v976, %v1045
    %v1047 = vpop.f32.mrf.mxu0
    %1048 = vdwg.mxu0
    %v1049 = vlaneseq
    %v1050 = vand.u32 %v1049, 127
    %vm1051 = vcmp.lt.s32.totalorder %v1050, 12
    %vm1052 = vcmp.ge.s32.totalorder %v1050, 12
    %vm1053 = vcmp.lt.s32.totalorder %v1050, 15
    %vm1054 = vmand %vm1052, %vm1053
    %vm1055 = vcmp.ge.s32.totalorder %v1050, 15
    %vm1056 = vcmp.lt.s32.totalorder %v1050, 18
    %vm1057 = vmand %vm1055, %vm1056
    %v1058 = vtanh.pop %v1046
    %v1059 = vsub.f32 0.0, %v1046
    %v1060 = vmul.f32 %v1059, 1.442695
    %v1061 = vpow.pop %v1060
    %v1062 = vadd.f32 %v1061, 1.0
    %v1063 = vrcp.pop %v1062
    %v1064 = vmul.f32 1.0, %v1063
    %v1065 = vsel %vm1057, %v1046, -inf
    %vm1066 = vcmask 1041408
    %v1067 = vsel %vm1066, %v1065, -inf
    %1068 = vmax.xlane.f32.xlu0 %v1067
    %v1069 = vpop.xlane.xlu0 %1068
    %v1070 = vsub.f32 %v1065, %v1069
    %v1071 = vmul.f32 %v1070, 1.442695
    %v1072 = vpow.pop %v1071
    %v1073 = vsel %vm1066, %v1072, 0.0
    %1074 = vadd.xlane.f32.xlu0 %v1073
    %v1075 = vpop.xlane.xlu0 %1074
    %v1076 = vrcp.pop %v1075
    %v1077 = vmul.f32 %v1072, %v1076
    %v1078 = vsel %vm1051, %v1058, %v1046
    %v1079 = vsel %vm1054, %v1064, %v1078
    %v1080 = vsel %vm1057, %v1077, %v1079
    %1081 = vst [vmem:[#allocation11] sm:$0x3] %v1080
    // Predicated region
    $region50: #{tpu_custom_call.1} parent=1 // pred_check
      _
    $region51: #{tpu_custom_call.1} parent=1 // pred_check_branch
      %1083 = sbr.rel (0) target = $region53
    $region52: #{tpu_custom_call.1} parent=1 // pred_region
      %s1085 = ssub.s32 32, 32
      %1086 = vsyncadd [#allocation4], %s1085
      %s1088 = sshll.u32 [#allocation11], 4
      %s1089 = int_to_ptr.vmem [resolvable:$true] %s1088
      %1091 = dma.vmem_to_hbm [thread:$0]  %s1089, 32, %s7, [#allocation4]
    $region53: #{tpu_custom_call.1} parent=1 // pred_fallthru
      _
    // Predicated region
    $region54: #{tpu_custom_call.1} parent=1 // pred_check
      _
    $region55: #{tpu_custom_call.1} parent=1 // pred_check_branch
      %1093 = sbr.rel (0) target = $region57
    $region56: #{tpu_custom_call.1} parent=1 // pred_region
      %1094 = dma.done [#allocation4], 32
    $region57: #{tpu_custom_call.1} parent=1 // pred_fallthru
      _
    %1095 = vsyncpa [#allocation3], 1
    %1096 = vsyncpa [#allocation6], 1
    %1097 = vsyncpa [#allocation9], 1
    %1098 = vsyncpa [#allocation4], 1

</llo_original>
